<compile_context>
chip_gen: v6e
topology: v6e:2x2x1
jax: 0.10.0
libtpu: 0.0.40
codegen_flags: <defaults>
</compile_context>

<pallas_src>
import jax
import jax.numpy as jnp
from jax import lax
from jax.experimental import pallas as pl
from jax.experimental.pallas import tpu as pltpu

LN_EPS = 1e-5
OUT_LANES = 128      # lane-dense padded width of the out_proj output
NUM_CLASSES = 2


def _round_up(x, m):
    return (x + m - 1) // m * m


def _choose_tb(batch):
    """Batch tile: >=2 grid steps when possible (v7x megacore), large tiles to
    amortize per-step overhead (v6e/v5e), MXU-friendly multiples of 256 when
    big, capped at 1024 rows."""
    if batch <= 8:
        return batch                      # single block == full batch dim
    half = -(-batch // 2)                 # ceil(batch / 2) -> at least 2 steps
    tb = _round_up(half, 8)
    if tb >= 256:
        tb = _round_up(tb, 256)
    return min(tb, 1024)


def _roberta_head_kernel(x_ref, wd_ref, bd_ref, wo_ref, bo_ref, o_ref):
    # x_ref : [TB, H]          f32   CLS-token features (batch tile)
    # wd_ref: [H, H]           bf16  dense weight, stored (in, out)
    # bd_ref: [1, H]           f32   dense bias
    # wo_ref: [H, OUT_LANES]   bf16  gamma-folded out_proj weight, zero-padded cols
    # bo_ref: [1, OUT_LANES]   f32   beta-folded out_proj bias, zero-padded
    # o_ref : [TB, OUT_LANES]  bf16  padded logits (cols >= NUM_CLASSES are zero)
    x = x_ref[...]

    # dense (bf16 MXU matmul, f32 accumulate) + bias + tanh (EUP, f32)
    h = jnp.dot(x.astype(jnp.bfloat16), wd_ref[...],
                preferred_element_type=jnp.float32)
    h = jnp.tanh(h + bd_ref[...])

    # LayerNorm over hidden dim, one-pass stats (h in [-1, 1] => numerically
    # safe). gamma/beta are already folded into wo/bo in the wrapper.
    mean = jnp.mean(h, axis=-1, keepdims=True)
    msq = jnp.mean(h * h, axis=-1, keepdims=True)
    var = jnp.maximum(msq - mean * mean, 0.0)
    n = (h - mean) * lax.rsqrt(var + LN_EPS)

    # out_proj (lane-dense, padded to OUT_LANES, bf16 MXU, f32 accumulate)
    logits = jnp.dot(n.astype(jnp.bfloat16), wo_ref[...],
                     preferred_element_type=jnp.float32) + bo_ref[...]
    o_ref[...] = logits.astype(o_ref.dtype)


def prepare_head_params(params):
    """One-time parameter prep: bf16 casts, LayerNorm-affine fold, lane padding.
    Call once and reuse; keeps this work off the per-call hot path."""
    H = params["dense_w"].shape[0]
    wd_bf16 = params["dense_w"].astype(jnp.bfloat16)                   # [H, H]
    bd = params["dense_b"].reshape(1, H).astype(jnp.float32)           # [1, H]
    # Fold LayerNorm affine into out_proj (exact; dropout is identity in eval):
    #   (n * gamma + beta) @ W + b == n @ (gamma[:, None] * W) + (beta @ W + b)
    wo = params["ln_gamma"][:, None] * params["out_w"]                 # [H, 2]
    bo = params["ln_beta"] @ params["out_w"] + params["out_b"]         # [2]
    wo_pad = (jnp.zeros((H, OUT_LANES), jnp.float32)
              .at[:, :NUM_CLASSES].set(wo).astype(jnp.bfloat16))
    bo_pad = jnp.zeros((1, OUT_LANES), jnp.float32).at[:, :NUM_CLASSES].set(bo)
    return {"wd": wd_bf16, "bd": bd, "wo": wo_pad, "bo": bo_pad}


def roberta_classification_head(features, prep):
    """features: [B, S, H] float32, prep from prepare_head_params -> [B, 2] f32."""
    B, S, H = features.shape

    # Fused CLS slice: view [B, S*H]; the kernel's x block only ever touches
    # lanes [0, H) of each row, which is exactly features[:, 0, :].
    if H % 128 == 0:
        x_in = features.reshape(B, S * H)
    else:
        # TODO(synk): lane dim not 128-aligned; fall back to an XLA CLS slice
        # (costs one extra [B, H] HBM round trip).
        x_in = features[:, 0, :]

    TB = _choose_tb(B)
    grid = (pl.cdiv(B, TB),)

    # VMEM budget: double-buffered x tile + output, resident weights (constant
    # index_map, fetched once but double-buffer allocated), biases.
    # TODO(synk): on v7x, pipeline_mode=pl.Buffered(1) on the constant weight
    # specs would drop the second weight buffer (~2 MiB at H=1024).
    vmem_need = 2 * (TB * H * 4 + TB * OUT_LANES * 2
                     + H * H * 2 + H * OUT_LANES * 2
                     + H * 4 + OUT_LANES * 4)
    vmem_limit = int(min(64 << 20, max(32 << 20, int(vmem_need * 1.5))))

    out = pl.pallas_call(
        _roberta_head_kernel,
        out_shape=jax.ShapeDtypeStruct((B, OUT_LANES), jnp.bfloat16),
        grid=grid,
        in_specs=[
            pl.BlockSpec((TB, H), lambda i: (i, 0)),           # CLS rows of x
            pl.BlockSpec((H, H), lambda i: (0, 0)),            # dense W (resident)
            pl.BlockSpec((1, H), lambda i: (0, 0)),            # dense b
            pl.BlockSpec((H, OUT_LANES), lambda i: (0, 0)),    # fused out_proj W
            pl.BlockSpec((1, OUT_LANES), lambda i: (0, 0)),    # fused out_proj b
        ],
        out_specs=pl.BlockSpec((TB, OUT_LANES), lambda i: (i, 0)),
        compiler_params=pltpu.CompilerParams(
            dimension_semantics=("parallel",),
            vmem_limit_bytes=vmem_limit),
    )(x_in, prep["wd"], prep["bd"], prep["wo"], prep["bo"])

    return out[:, :NUM_CLASSES].astype(jnp.float32)


def init_params(key, hidden_size):
    """Deterministic synthetic parameters matching the module's shapes."""
    k1, k2, k3, k4 = jax.random.split(key, 4)
    scale = 1.0 / jnp.sqrt(hidden_size)
    return {
        # stored as (in, out) so the kernel does x @ W directly
        "dense_w": jax.random.normal(k1, (hidden_size, hidden_size), jnp.float32) * scale,
        "dense_b": jax.random.normal(k2, (hidden_size,), jnp.float32) * 0.01,
        "ln_gamma": jnp.ones((hidden_size,), jnp.float32),
        "ln_beta": jnp.zeros((hidden_size,), jnp.float32),
        "out_w": jax.random.normal(k3, (hidden_size, 2), jnp.float32) * scale,
        "out_b": jax.random.normal(k4, (2,), jnp.float32) * 0.01,
    }


def _reference(features, params):
    """Pure-JAX f32 reference for correctness check."""
    x = features[:, 0, :]
    h = jnp.tanh(x @ params["dense_w"] + params["dense_b"])
    mean = jnp.mean(h, axis=-1, keepdims=True)
    var = jnp.mean((h - mean) ** 2, axis=-1, keepdims=True)
    h = (h - mean) / jnp.sqrt(var + LN_EPS)
    h = h * params["ln_gamma"] + params["ln_beta"]
    return h @ params["out_w"] + params["out_b"]


if __name__ == "__main__":
    # hidden=128 keeps the shape small while exercising the fused (lane-aligned)
    # CLS-slice path.
    B, S, H = 2, 8, 128
    key = jax.random.PRNGKey(0)
    k_feat, k_param = jax.random.split(key)

    features = jax.random.normal(k_feat, (B, S, H), jnp.float32)
    params = init_params(k_param, H)

    # TODO(synk): dropout is a no-op in eval mode; training-mode dropout
    # (stochastic masking) is not implemented.
    prep = prepare_head_params(params)                    # one-time prep (hoisted)
    head = jax.jit(roberta_classification_head)
    logits = jax.block_until_ready(head(features, prep))

    ref = _reference(features, params)
    assert logits.shape == (B, NUM_CLASSES), logits.shape
    # bf16 matmuls + bf16 logit store in the kernel -> loosened tolerance.
    assert jnp.allclose(logits, ref, atol=5e-2, rtol=5e-2), (logits, ref)
    print("KERNEL_OK")
</pallas_src>

<mosaic_0001>
module attributes {stable_mosaic.version = 11 : i64} {
  func.func @_roberta_head_kernel(%arg0: i32, %arg1: memref<2x128xf32, #tpu.memory_space<vmem>>, %arg2: memref<128x128xbf16, #tpu.memory_space<vmem>>, %arg3: memref<1x128xf32, #tpu.memory_space<vmem>>, %arg4: memref<128x128xbf16, #tpu.memory_space<vmem>>, %arg5: memref<1x128xf32, #tpu.memory_space<vmem>>, %arg6: memref<2x128xbf16, #tpu.memory_space<vmem>>) attributes {dimension_semantics = [#tpu.dimension_semantics<parallel>], iteration_bounds = array<i64: 1>, scalar_prefetch = 0 : i64, scratch_operands = 0 : i64, tpu.core_type = #tpu.core_type<tc>, window_params = [{transform_indices = @transform_0, window_bounds = array<i64: 2, 128>}, {pipeline_mode = #tpu.pipeline_mode<synchronous>, transform_indices = @transform_1, window_bounds = array<i64: 128, 128>}, {pipeline_mode = #tpu.pipeline_mode<synchronous>, transform_indices = @transform_2, window_bounds = array<i64: 1, 128>}, {pipeline_mode = #tpu.pipeline_mode<synchronous>, transform_indices = @transform_3, window_bounds = array<i64: 128, 128>}, {pipeline_mode = #tpu.pipeline_mode<synchronous>, transform_indices = @transform_4, window_bounds = array<i64: 1, 128>}, {transform_indices = @transform_5, window_bounds = array<i64: 2, 128>}]} {
    %c0 = arith.constant 0 : index
    %c0_0 = arith.constant 0 : index
    %0 = vector.load %arg1[%c0, %c0_0] : memref<2x128xf32, #tpu.memory_space<vmem>>, vector<2x128xf32>
    %1 = arith.truncf %0 : vector<2x128xf32> to vector<2x128xbf16>
    %c0_1 = arith.constant 0 : index
    %c0_2 = arith.constant 0 : index
    %2 = vector.load %arg2[%c0_1, %c0_2] : memref<128x128xbf16, #tpu.memory_space<vmem>>, vector<128x128xbf16>
    %cst = arith.constant dense<0.000000e+00> : vector<2x128xf32>
    %3 = tpu.matmul %1, %2, %cst {dimension_numbers = #tpu.dot_dimension_numbers<[1], [0], [0], [1], [0, 0, 1, 1], [], []>} : vector<2x128xbf16>, vector<128x128xbf16>, vector<2x128xf32> -> vector<2x128xf32>
    %c0_3 = arith.constant 0 : index
    %c0_4 = arith.constant 0 : index
    %4 = vector.load %arg3[%c0_3, %c0_4] : memref<1x128xf32, #tpu.memory_space<vmem>>, vector<1x128xf32>
    %5 = vector.broadcast %4 : vector<1x128xf32> to vector<2x128xf32>
    %6 = arith.addf %3, %5 : vector<2x128xf32>
    %7 = math.tanh %6 : vector<2x128xf32>
    %cst_5 = arith.constant dense<0.000000e+00> : vector<2xf32>
    %8 = vector.multi_reduction <add>, %7, %cst_5 [1] : vector<2x128xf32> to vector<2xf32>
    %9 = vector.shape_cast %8 : vector<2xf32> to vector<2x1xf32>
    %cst_6 = arith.constant 1.280000e+02 : f32
    %10 = vector.broadcast %cst_6 : f32 to vector<2x1xf32>
    %11 = arith.divf %9, %10 : vector<2x1xf32>
    %12 = arith.mulf %7, %7 : vector<2x128xf32>
    %cst_7 = arith.constant dense<0.000000e+00> : vector<2xf32>
    %13 = vector.multi_reduction <add>, %12, %cst_7 [1] : vector<2x128xf32> to vector<2xf32>
    %14 = vector.shape_cast %13 : vector<2xf32> to vector<2x1xf32>
    %cst_8 = arith.constant 1.280000e+02 : f32
    %15 = vector.broadcast %cst_8 : f32 to vector<2x1xf32>
    %16 = arith.divf %14, %15 : vector<2x1xf32>
    %17 = arith.mulf %11, %11 : vector<2x1xf32>
    %18 = arith.subf %16, %17 : vector<2x1xf32>
    %cst_9 = arith.constant 0.000000e+00 : f32
    %19 = vector.broadcast %cst_9 : f32 to vector<2x1xf32>
    %20 = arith.maximumf %18, %19 : vector<2x1xf32>
    %21 = vector.broadcast %11 : vector<2x1xf32> to vector<2x128xf32>
    %22 = arith.subf %7, %21 : vector<2x128xf32>
    %cst_10 = arith.constant 9.99999974E-6 : f32
    %23 = vector.broadcast %cst_10 : f32 to vector<2x1xf32>
    %24 = arith.addf %20, %23 : vector<2x1xf32>
    %25 = math.rsqrt %24 : vector<2x1xf32>
    %26 = vector.broadcast %25 : vector<2x1xf32> to vector<2x128xf32>
    %27 = arith.mulf %22, %26 : vector<2x128xf32>
    %28 = arith.truncf %27 : vector<2x128xf32> to vector<2x128xbf16>
    %c0_11 = arith.constant 0 : index
    %c0_12 = arith.constant 0 : index
    %29 = vector.load %arg4[%c0_11, %c0_12] : memref<128x128xbf16, #tpu.memory_space<vmem>>, vector<128x128xbf16>
    %cst_13 = arith.constant dense<0.000000e+00> : vector<2x128xf32>
    %30 = tpu.matmul %28, %29, %cst_13 {dimension_numbers = #tpu.dot_dimension_numbers<[1], [0], [0], [1], [0, 0, 1, 1], [], []>} : vector<2x128xbf16>, vector<128x128xbf16>, vector<2x128xf32> -> vector<2x128xf32>
    %c0_14 = arith.constant 0 : index
    %c0_15 = arith.constant 0 : index
    %31 = vector.load %arg5[%c0_14, %c0_15] : memref<1x128xf32, #tpu.memory_space<vmem>>, vector<1x128xf32>
    %32 = vector.broadcast %31 : vector<1x128xf32> to vector<2x128xf32>
    %33 = arith.addf %30, %32 : vector<2x128xf32>
    %34 = arith.truncf %33 : vector<2x128xf32> to vector<2x128xbf16>
    %c0_16 = arith.constant 0 : index
    %c0_17 = arith.constant 0 : index
    %35 = vector.load %arg6[%c0_16, %c0_17] : memref<2x128xbf16, #tpu.memory_space<vmem>>, vector<2x128xbf16>
    tpu.vector_store %arg6[%c0_16, %c0_17], %34 {strides = array<i32>} : memref<2x128xbf16, #tpu.memory_space<vmem>>, vector<2x128xbf16>,
    return
  }
  func.func @transform_0(%arg0: i32) -> (i32, i32) {
    %c0_i32 = arith.constant 0 : i32
    %c0_i32_0 = arith.constant 0 : i32
    return %arg0, %c0_i32 : i32, i32
  }
  func.func @transform_1(%arg0: i32) -> (i32, i32) {
    %c0_i32 = arith.constant 0 : i32
    %c0_i32_0 = arith.constant 0 : i32
    %c0_i32_1 = arith.constant 0 : i32
    return %c0_i32, %c0_i32_0 : i32, i32
  }
  func.func @transform_2(%arg0: i32) -> (i32, i32) {
    %c0_i32 = arith.constant 0 : i32
    %c0_i32_0 = arith.constant 0 : i32
    %c0_i32_1 = arith.constant 0 : i32
    return %c0_i32, %c0_i32_0 : i32, i32
  }
  func.func @transform_3(%arg0: i32) -> (i32, i32) {
    %c0_i32 = arith.constant 0 : i32
    %c0_i32_0 = arith.constant 0 : i32
    %c0_i32_1 = arith.constant 0 : i32
    return %c0_i32, %c0_i32_0 : i32, i32
  }
  func.func @transform_4(%arg0: i32) -> (i32, i32) {
    %c0_i32 = arith.constant 0 : i32
    %c0_i32_0 = arith.constant 0 : i32
    %c0_i32_1 = arith.constant 0 : i32
    return %c0_i32, %c0_i32_0 : i32, i32
  }
  func.func @transform_5(%arg0: i32) -> (i32, i32) {
    %c0_i32 = arith.constant 0 : i32
    %c0_i32_0 = arith.constant 0 : i32
    return %arg0, %c0_i32 : i32, i32
  }
}

</mosaic_0001>

<llo_original>
// kernel: roberta_classification_head.1
$region0: #{roberta_classification_head.1}
  #allocation0 [shape = 'u32[]', space=smem, size = 0x4, offset = 0x4, fixed_abs, tag = 'smem constant byte address 0x4 - core index']
  #allocation1 [shape = 'u32[144,128]{1,0:T(1,128)}', space=vmem, size = 0x12000, scoped, tag = 'internal scratch']
  %s0 = inlined_call_operand.vmem [shape: f32[2,1024], index: 0, kind: input, shape index: {}]
  %s1 = inlined_call_operand.hbm [shape: bf16[128,128], index: 1, kind: input, shape index: {}]
  %s2 = inlined_call_operand.vmem [shape: f32[1,128], index: 2, kind: input, shape index: {}]
  %s3 = inlined_call_operand.hbm [shape: bf16[128,128], index: 3, kind: input, shape index: {}]
  %s4 = inlined_call_operand.vmem [shape: f32[1,128], index: 4, kind: input, shape index: {}]
  %s5 = inlined_call_operand.vmem [shape: bf16[2,128], index: 5, kind: output, shape index: {}]
  %s6 = sld [smem:[#allocation0]]
  $region38: #{roberta_classification_head.1} parent=0
    _
  %s8 = ssub.s32 1, %s6
  %s9 = scalar_select 0, %s8, %s6
  $region1: #{roberta_classification_head.1} parent=0
    #allocation2 [shape = 'u8[32768]{0}', space=vmem, size = 0x8000, scoped, tag = 'input window, operand 1, single buffered']
    #allocation3 [shape = 's32[1]{0}', space=sflag, size = 0x4, scoped, tag = 'scoped memory for roberta_classification_head.1']
    #allocation4 [shape = 'u8[32768]{0}', space=vmem, size = 0x8000, scoped, tag = 'input window, operand 3, single buffered']
    #allocation5 [shape = 's32[1]{0}', space=sflag, size = 0x4, scoped, tag = 'scoped memory for roberta_classification_head.1']
    %10 = vsyncpa [#allocation3], 0
    %11 = vsyncpa [#allocation5], 0
    // Predicated region
    $region2: #{roberta_classification_head.1} parent=1 // pred_check
      _
    $region3: #{roberta_classification_head.1} parent=1 // pred_check_branch
      %13 = sbr.rel (0) target = $region5
    $region4: #{roberta_classification_head.1} parent=1 // pred_region
      _
    $region5: #{roberta_classification_head.1} parent=1 // pred_fallthru
      _
    // Predicated region
    $region6: #{roberta_classification_head.1} parent=1 // pred_check
      _
    $region7: #{roberta_classification_head.1} parent=1 // pred_check_branch
      %15 = sbr.rel (0) target = $region9
    $region8: #{roberta_classification_head.1} parent=1 // pred_region
      %s17 = ssub.s32 1024, 1024
      %18 = vsyncadd [#allocation3], %s17
      %s19 = sshll.u32 [#allocation2], 4
      %s20 = int_to_ptr.vmem [resolvable:$true] %s19
      %25 = dma.hbm_to_vmem [thread:$0]  %s1, 1024, %s20, [#allocation3], 64, 64, 4
    $region9: #{roberta_classification_head.1} parent=1 // pred_fallthru
      _
    // Predicated region
    $region10: #{roberta_classification_head.1} parent=1 // pred_check
      _
    $region11: #{roberta_classification_head.1} parent=1 // pred_check_branch
      %27 = sbr.rel (0) target = $region13
    $region12: #{roberta_classification_head.1} parent=1 // pred_region
      _
    $region13: #{roberta_classification_head.1} parent=1 // pred_fallthru
      _
    // Predicated region
    $region14: #{roberta_classification_head.1} parent=1 // pred_check
      _
    $region15: #{roberta_classification_head.1} parent=1 // pred_check_branch
      %29 = sbr.rel (0) target = $region17
    $region16: #{roberta_classification_head.1} parent=1 // pred_region
      %s31 = ssub.s32 1024, 1024
      %32 = vsyncadd [#allocation5], %s31
      %s33 = sshll.u32 [#allocation4], 4
      %s34 = int_to_ptr.vmem [resolvable:$true] %s33
      %39 = dma.hbm_to_vmem [thread:$0]  %s3, 1024, %s34, [#allocation5], 64, 64, 4
    $region17: #{roberta_classification_head.1} parent=1 // pred_fallthru
      _
    // Predicated region
    $region18: #{roberta_classification_head.1} parent=1 // pred_check
      _
    $region19: #{roberta_classification_head.1} parent=1 // pred_check_branch
      %41 = sbr.rel (0) target = $region21
    $region20: #{roberta_classification_head.1} parent=1 // pred_region
      _
    $region21: #{roberta_classification_head.1} parent=1 // pred_fallthru
      _
    // Predicated region
    $region22: #{roberta_classification_head.1} parent=1 // pred_check
      _
    $region23: #{roberta_classification_head.1} parent=1 // pred_check_branch
      %43 = sbr.rel (0) target = $region25
    $region24: #{roberta_classification_head.1} parent=1 // pred_region
      %44 = dma.done [#allocation3], 1024
    $region25: #{roberta_classification_head.1} parent=1 // pred_fallthru
      _
    // Predicated region
    $region26: #{roberta_classification_head.1} parent=1 // pred_check
      _
    $region27: #{roberta_classification_head.1} parent=1 // pred_check_branch
      %46 = sbr.rel (0) target = $region29
    $region28: #{roberta_classification_head.1} parent=1 // pred_region
      %47 = dma.done [#allocation5], 1024
    $region29: #{roberta_classification_head.1} parent=1 // pred_fallthru
      _
    %v49 = vld [vmem:[%s0] sm:$0x3]
    %v50 = vpack.c.bf16 %v49, %v49
    %v51 = vld [vmem:[#allocation2] sm:$0xf]
    %v52 = vld [vmem:[#allocation2 + $0x4] sm:$0xf]
    %v53 = vld [vmem:[#allocation2 + $0x8] sm:$0xf]
    %v54 = vld [vmem:[#allocation2 + $0xc] sm:$0xf]
    %v55 = vld [vmem:[#allocation2 + $0x10] sm:$0xf]
    %v56 = vld [vmem:[#allocation2 + $0x14] sm:$0xf]
    %v57 = vld [vmem:[#allocation2 + $0x18] sm:$0xf]
    %v58 = vld [vmem:[#allocation2 + $0x1c] sm:$0xf]
    %v59 = vld [vmem:[#allocation2 + $0x20] sm:$0xf]
    %v60 = vld [vmem:[#allocation2 + $0x24] sm:$0xf]
    %v61 = vld [vmem:[#allocation2 + $0x28] sm:$0xf]
    %v62 = vld [vmem:[#allocation2 + $0x2c] sm:$0xf]
    %v63 = vld [vmem:[#allocation2 + $0x30] sm:$0xf]
    %v64 = vld [vmem:[#allocation2 + $0x34] sm:$0xf]
    %v65 = vld [vmem:[#allocation2 + $0x38] sm:$0xf]
    %v66 = vld [vmem:[#allocation2 + $0x3c] sm:$0xf]
    %v67 = vld [vmem:[%s2] sm:$0x1]
    %v69 = vlaneseq
    %v70 = vshrl.u32 %v69, 7
    %v71 = vsub.s32 0, %v70
    %v72 = vrot.slane %v67, %v71
    %v90 = vunpack.c.l.b16 %v51
    %v91 = vunpack.c.l.b16 %v52
    %v92 = vunpack.c.l.b16 %v53
    %v93 = vunpack.c.l.b16 %v54
    %v94 = vunpack.c.l.b16 %v55
    %v95 = vunpack.c.l.b16 %v56
    %v96 = vunpack.c.l.b16 %v57
    %v97 = vunpack.c.l.b16 %v58
    %v98 = vunpack.c.l.b16 %v59
    %v99 = vunpack.c.l.b16 %v60
    %v100 = vunpack.c.l.b16 %v61
    %v101 = vunpack.c.l.b16 %v62
    %v102 = vunpack.c.l.b16 %v63
    %v103 = vunpack.c.l.b16 %v64
    %v104 = vunpack.c.l.b16 %v65
    %v105 = vunpack.c.l.b16 %v66
    %v106 = vpack.c.b16 %v91, %v90
    %v107 = vpack.c.b16 %v93, %v92
    %v108 = vpack.c.b16 %v95, %v94
    %v109 = vpack.c.b16 %v97, %v96
    %v110 = vpack.c.b16 %v99, %v98
    %v111 = vpack.c.b16 %v101, %v100
    %v112 = vpack.c.b16 %v103, %v102
    %v113 = vpack.c.b16 %v105, %v104
    %122 = vmatprep.subr.bf16.mxu0 0
    %123 = vmatpush1.bf16.msra.mxu0 %v113
    %124 = vmatprep.subr.bf16.mxu0 0
    %125 = vmatpush1.bf16.msra.mxu0 %v112
    %126 = vmatprep.subr.bf16.mxu0 0
    %127 = vmatpush1.bf16.msra.mxu0 %v111
    %128 = vmatprep.subr.bf16.mxu0 0
    %129 = vmatpush1.bf16.msra.mxu0 %v110
    %130 = vmatprep.subr.bf16.mxu0 0
    %131 = vmatpush1.bf16.msra.mxu0 %v109
    %132 = vmatprep.subr.bf16.mxu0 0
    %133 = vmatpush1.bf16.msra.mxu0 %v108
    %134 = vmatprep.subr.bf16.mxu0 0
    %135 = vmatpush1.bf16.msra.mxu0 %v107
    %136 = vmatprep.subr.bf16.mxu0 0
    %137 = vmatpush1.bf16.msra.mxu0 %v106
    %138 = vmatprep.subr.bf16.mxu0 0
    %139 = vmatpush2.bf16.msra.mxu0 0
    %140 = vmatprep.subr.bf16.mxu0 0
    %141 = vmatpush2.bf16.msra.mxu0 0
    %142 = vmatprep.subr.bf16.mxu0 0
    %143 = vmatpush2.bf16.msra.mxu0 0
    %144 = vmatprep.subr.bf16.mxu0 0
    %145 = vmatpush2.bf16.msra.mxu0 0
    %146 = vmatprep.subr.bf16.mxu0 0
    %147 = vmatpush2.bf16.msra.mxu0 0
    %148 = vmatprep.subr.bf16.mxu0 0
    %149 = vmatpush2.bf16.msra.mxu0 0
    %150 = vmatprep.subr.bf16.mxu0 0
    %151 = vmatpush2.bf16.msra.mxu0 0
    %152 = vmatprep.subr.bf16.mxu0 0
    %153 = vmatpush2.bf16.msra.mxu0 0
    %154 = vmatprep.mubr.bf16.mxu0 0
    %155 = vmatmul.mubr.bf16.gmra.mxu0 %v50
    %v156 = vpop.f32.mrf.mxu0
    %v157 = vadd.f32 %v72, %v156
    %v158 = vpop.f32.mrf.mxu0
    %v159 = vpop.f32.mrf.mxu0
    %v160 = vpop.f32.mrf.mxu0
    %161 = vdwg.mxu0
    %v162 = vtanh.pop %v157
    %vm163 = vcmask 1041408
    %v164 = vsel %vm163, %v162, 0.0
    %165 = vadd.xlane.f32.xlu0 %v164
    %v166 = vpop.xlane.xlu0 %165
    %v167 = vrcp.pop 128.0
    %v168 = vmul.f32 %v166, %v167
    %v169 = vmul.f32 %v162, %v162
    %v170 = vsel %vm163, %v169, 0.0
    %171 = vadd.xlane.f32.xlu0 %v170
    %v172 = vpop.xlane.xlu0 %171
    %v173 = vmul.f32 %v172, %v167
    %v174 = vmul.f32 %v168, %v168
    %v175 = vsub.f32 %v173, %v174
    %v176 = vmax.f32 %v175, 0.0
    %v177 = vsub.f32 %v162, %v168
    %v178 = vadd.f32 %v176, 1e-05
    %v179 = vrsqrt.pop %v178
    %v180 = vmul.f32 %v177, %v179
    %v181 = vpack.c.bf16 %v180, %v180
    %v182 = vld [vmem:[#allocation4] sm:$0xf]
    %v183 = vld [vmem:[#allocation4 + $0x4] sm:$0xf]
    %v184 = vld [vmem:[#allocation4 + $0x8] sm:$0xf]
    %v185 = vld [vmem:[#allocation4 + $0xc] sm:$0xf]
    %v186 = vld [vmem:[#allocation4 + $0x10] sm:$0xf]
    %v187 = vld [vmem:[#allocation4 + $0x14] sm:$0xf]
    %v188 = vld [vmem:[#allocation4 + $0x18] sm:$0xf]
    %v189 = vld [vmem:[#allocation4 + $0x1c] sm:$0xf]
    %v190 = vld [vmem:[#allocation4 + $0x20] sm:$0xf]
    %v191 = vld [vmem:[#allocation4 + $0x24] sm:$0xf]
    %v192 = vld [vmem:[#allocation4 + $0x28] sm:$0xf]
    %v193 = vld [vmem:[#allocation4 + $0x2c] sm:$0xf]
    %v194 = vld [vmem:[#allocation4 + $0x30] sm:$0xf]
    %v195 = vld [vmem:[#allocation4 + $0x34] sm:$0xf]
    %v196 = vld [vmem:[#allocation4 + $0x38] sm:$0xf]
    %v197 = vld [vmem:[#allocation4 + $0x3c] sm:$0xf]
    %v198 = vld [vmem:[%s4] sm:$0x1]
    %v200 = vlaneseq
    %v201 = vshrl.u32 %v200, 7
    %v202 = vsub.s32 0, %v201
    %v203 = vrot.slane %v198, %v202
    %v221 = vunpack.c.l.b16 %v182
    %v222 = vunpack.c.l.b16 %v183
    %v223 = vunpack.c.l.b16 %v184
    %v224 = vunpack.c.l.b16 %v185
    %v225 = vunpack.c.l.b16 %v186
    %v226 = vunpack.c.l.b16 %v187
    %v227 = vunpack.c.l.b16 %v188
    %v228 = vunpack.c.l.b16 %v189
    %v229 = vunpack.c.l.b16 %v190
    %v230 = vunpack.c.l.b16 %v191
    %v231 = vunpack.c.l.b16 %v192
    %v232 = vunpack.c.l.b16 %v193
    %v233 = vunpack.c.l.b16 %v194
    %v234 = vunpack.c.l.b16 %v195
    %v235 = vunpack.c.l.b16 %v196
    %v236 = vunpack.c.l.b16 %v197
    %v237 = vpack.c.b16 %v222, %v221
    %v238 = vpack.c.b16 %v224, %v223
    %v239 = vpack.c.b16 %v226, %v225
    %v240 = vpack.c.b16 %v228, %v227
    %v241 = vpack.c.b16 %v230, %v229
    %v242 = vpack.c.b16 %v232, %v231
    %v243 = vpack.c.b16 %v234, %v233
    %v244 = vpack.c.b16 %v236, %v235
    %253 = vmatprep.subr.bf16.mxu0 0
    %254 = vmatpush1.bf16.msra.mxu0 %v244
    %255 = vmatprep.subr.bf16.mxu0 0
    %256 = vmatpush1.bf16.msra.mxu0 %v243
    %257 = vmatprep.subr.bf16.mxu0 0
    %258 = vmatpush1.bf16.msra.mxu0 %v242
    %259 = vmatprep.subr.bf16.mxu0 0
    %260 = vmatpush1.bf16.msra.mxu0 %v241
    %261 = vmatprep.subr.bf16.mxu0 0
    %262 = vmatpush1.bf16.msra.mxu0 %v240
    %263 = vmatprep.subr.bf16.mxu0 0
    %264 = vmatpush1.bf16.msra.mxu0 %v239
    %265 = vmatprep.subr.bf16.mxu0 0
    %266 = vmatpush1.bf16.msra.mxu0 %v238
    %267 = vmatprep.subr.bf16.mxu0 0
    %268 = vmatpush1.bf16.msra.mxu0 %v237
    %269 = vmatprep.subr.bf16.mxu0 0
    %270 = vmatpush2.bf16.msra.mxu0 0
    %271 = vmatprep.subr.bf16.mxu0 0
    %272 = vmatpush2.bf16.msra.mxu0 0
    %273 = vmatprep.subr.bf16.mxu0 0
    %274 = vmatpush2.bf16.msra.mxu0 0
    %275 = vmatprep.subr.bf16.mxu0 0
    %276 = vmatpush2.bf16.msra.mxu0 0
    %277 = vmatprep.subr.bf16.mxu0 0
    %278 = vmatpush2.bf16.msra.mxu0 0
    %279 = vmatprep.subr.bf16.mxu0 0
    %280 = vmatpush2.bf16.msra.mxu0 0
    %281 = vmatprep.subr.bf16.mxu0 0
    %282 = vmatpush2.bf16.msra.mxu0 0
    %283 = vmatprep.subr.bf16.mxu0 0
    %284 = vmatpush2.bf16.msra.mxu0 0
    %285 = vmatprep.mubr.bf16.mxu0 0
    %286 = vmatmul.mubr.bf16.gmra.mxu0 %v181
    %v287 = vpop.f32.mrf.mxu0
    %v288 = vadd.f32 %v203, %v287
    %v289 = vpop.f32.mrf.mxu0
    %v290 = vpop.f32.mrf.mxu0
    %v291 = vpop.f32.mrf.mxu0
    %292 = vdwg.mxu0
    %v293 = vpack.c.bf16 %v288, %v288
    %294 = vst [vmem:[%s5] sm:$0x1] %v293
    // Predicated region
    $region30: #{roberta_classification_head.1} parent=1 // pred_check
      _
    $region31: #{roberta_classification_head.1} parent=1 // pred_check_branch
      %296 = sbr.rel (0) target = $region33
    $region32: #{roberta_classification_head.1} parent=1 // pred_region
      _
    $region33: #{roberta_classification_head.1} parent=1 // pred_fallthru
      _
    // Predicated region
    $region34: #{roberta_classification_head.1} parent=1 // pred_check
      _
    $region35: #{roberta_classification_head.1} parent=1 // pred_check_branch
      %298 = sbr.rel (0) target = $region37
    $region36: #{roberta_classification_head.1} parent=1 // pred_region
      _
    $region37: #{roberta_classification_head.1} parent=1 // pred_fallthru
      _
    %299 = vsyncpa [#allocation3], 1
    %300 = vsyncpa [#allocation5], 1

</llo_original>
